<compile_context>
chip_gen: v7x
topology: tpu7x:2x2x1
jax: 0.10.0
libtpu: 0.0.40
codegen_flags: <defaults>
</compile_context>

<pallas_src>
import jax
import jax.numpy as jnp
from jax import lax
from jax.experimental import pallas as pl
from jax.experimental.pallas import tpu as pltpu


def _round_up(n, m):
    return ((n + m - 1) // m) * m


def _sublane(itemsize):
    # Sub-32-bit dtypes pack along sublanes: the sublane tile grows accordingly.
    return 8 * max(1, 4 // itemsize)


def _tile_vmem_bytes(rows, cols, itemsize, nbuf=2):
    """VMEM footprint of a (rows, cols) tile incl. double buffering and
    lane/sublane padding."""
    return nbuf * _round_up(max(rows, 1), _sublane(itemsize)) * _round_up(max(cols, 1), 128) * itemsize


def _vmem_budget_bytes():
    """(tile budget, physical capacity) -- generation aware, safe fallback."""
    try:
        cap = int(pltpu.get_tpu_info().vmem_capacity_bytes)
    except Exception:
        cap = 64 * 1024 * 1024  # conservative: v7x per-TensorCore VMEM
    return int(cap * 0.7), cap


def _choose_tn(c_in, d_model, w_itemsize, budget):
    """Tile d_model only when the resident weight tile would eat > ~1/4 of the
    VMEM budget.  TN is either the full d_model or a multiple of 128."""
    if _tile_vmem_bytes(c_in, d_model, w_itemsize) <= budget // 4:
        return d_model
    rows = _round_up(c_in, _sublane(w_itemsize))
    tn = (budget // 4) // (2 * rows * w_itemsize)
    tn = max(128, (tn // 128) * 128)
    if tn >= d_model:
        return d_model
    return tn


def _choose_tm(M, c_in, tn, x_itemsize, out_itemsize, budget, resident_bytes):
    """Largest row tile (multiple of 8) whose double-buffered x/out tiles fit
    in the budget left after the resident weight/bias, with >=2 tiles for
    v7x megacore sharding."""
    if M <= 8:
        return M  # full extent; block dim == array dim is always legal
    rem = max(budget - resident_bytes, budget // 4)
    per_row = (2 * _round_up(c_in, 128) * x_itemsize
               + 2 * _round_up(tn, 128) * out_itemsize)
    tm = max(8, (rem // max(per_row, 1)) // 8 * 8)
    tm = min(tm, (M // 8) * 8)
    # Keep at least 2 row tiles so ("parallel",) can use both v7x TensorCores.
    if tm >= M:
        tm = _round_up(-(-M // 2), 8)
    return tm


def _embedding_kernel(x_ref, w_ref, b_ref, o_ref):
    # x_ref: (TM, c_in), w_ref: (c_in, TN), b_ref: (1, TN), o_ref: (TM, TN)
    # Plain NN contraction on the MXU (weight already pre-transposed in HBM),
    # accumulating in f32.  No in-kernel transpose / XLU relayout.
    acc = lax.dot_general(
        x_ref[...], w_ref[...],
        dimension_numbers=(((1,), (0,)), ((), ())),
        preferred_element_type=jnp.float32,
    )
    acc = acc + b_ref[...].astype(jnp.float32)  # broadcast bias over rows
    o_ref[...] = acc.astype(o_ref.dtype)


def embedding_layer(x_past, weight, bias, *, tm=None, tn=None):
    """x_past: [B, L, c_in], weight: [d_model, c_in], bias: [d_model]
    -> [B, L, d_model]  (y = x @ W.T + b)."""
    B, L, c_in = x_past.shape
    d_model = weight.shape[0]
    M = B * L

    x2d = x_past.reshape(M, c_in)
    w_t = jnp.transpose(weight)        # [c_in, d_model] -- one-time HBM transpose
    b2d = bias.reshape(1, d_model)

    x_isz = jnp.dtype(x_past.dtype).itemsize
    w_isz = jnp.dtype(weight.dtype).itemsize
    b_isz = jnp.dtype(bias.dtype).itemsize
    o_isz = x_isz  # output follows activation dtype (matches torch when dtypes agree)

    budget, vmem_cap = _vmem_budget_bytes()

    TN = tn if tn is not None else _choose_tn(c_in, d_model, w_isz, budget)
    w_fp = _tile_vmem_bytes(c_in, TN, w_isz)
    b_fp = _tile_vmem_bytes(1, TN, b_isz)
    TM = tm if tm is not None else _choose_tm(M, c_in, TN, x_isz, o_isz, budget,
                                              w_fp + b_fp)

    grid_m = pl.cdiv(M, TM)
    grid_n = pl.cdiv(d_model, TN)

    x_fp = _tile_vmem_bytes(TM, c_in, x_isz)
    o_fp = _tile_vmem_bytes(TM, TN, o_isz)
    total_fp = w_fp + b_fp + x_fp + o_fp
    vmem_limit = int(min(vmem_cap, max(32 << 20, total_fp * 6 // 5 + (4 << 20))))

    cost = pl.CostEstimate(
        flops=2 * M * c_in * d_model,
        transcendentals=0,
        bytes_accessed=(M * c_in * x_isz + c_in * d_model * w_isz
                        + d_model * b_isz + M * d_model * o_isz),
    )

    out2d = pl.pallas_call(
        _embedding_kernel,
        out_shape=jax.ShapeDtypeStruct((M, d_model), x_past.dtype),
        grid_spec=pltpu.PrefetchScalarGridSpec(
            num_scalar_prefetch=0,
            # N outer, M inner: the (possibly large) weight tile stays resident
            # across the whole row sweep; the tiny x tiles are re-streamed.
            grid=(grid_n, grid_m),
            in_specs=[
                # x: tiled over rows (block index independent of j)
                pl.BlockSpec((TM, c_in), lambda j, i: (i, 0)),
                # pre-transposed weight: tiled over d_model only
                pl.BlockSpec((c_in, TN), lambda j, i: (0, j)),
                # bias: tiled over d_model only
                pl.BlockSpec((1, TN), lambda j, i: (0, j)),
            ],
            out_specs=pl.BlockSpec((TM, TN), lambda j, i: (i, j)),
        ),
        compiler_params=pltpu.CompilerParams(
            # No reduction axis: both grid axes are independent tiles.
            dimension_semantics=("parallel", "parallel"),
            vmem_limit_bytes=vmem_limit,
        ),
        cost_estimate=cost,
    )(x2d, w_t, b2d)

    return out2d.reshape(B, L, d_model)


if __name__ == "__main__":
    # Small shapes consistent with the module's forward: [batch, seq, c_in]
    B, L, c_in, d_model = 2, 8, 4, 32

    key = jax.random.PRNGKey(0)
    kx, kw, kb = jax.random.split(key, 3)

    x_past = jax.random.normal(kx, (B, L, c_in), dtype=jnp.float32)

    # Deterministic nn.Linear-style init: U(-1/sqrt(c_in), 1/sqrt(c_in))
    bound = 1.0 / (c_in ** 0.5)
    weight = jax.random.uniform(kw, (d_model, c_in), minval=-bound, maxval=bound,
                                dtype=jnp.float32)
    bias = jax.random.uniform(kb, (d_model,), minval=-bound, maxval=bound,
                              dtype=jnp.float32)

    y = embedding_layer(x_past, weight, bias)
    y = jax.block_until_ready(y)

    # Cross-check against plain JAX reference
    y_ref = x_past @ weight.T + bias
    assert y.shape == (B, L, d_model)
    assert jnp.allclose(y, y_ref, atol=1e-5, rtol=1e-5)

    print("KERNEL_OK")
</pallas_src>

<mosaic_0001>
module attributes {stable_mosaic.version = 11 : i64} {
  func.func @_embedding_kernel(%arg0: i32, %arg1: i32, %arg2: memref<8x4xf32, #tpu.memory_space<vmem>>, %arg3: memref<4x32xf32, #tpu.memory_space<vmem>>, %arg4: memref<1x32xf32, #tpu.memory_space<vmem>>, %arg5: memref<8x32xf32, #tpu.memory_space<vmem>>) attributes {dimension_semantics = [#tpu.dimension_semantics<parallel>, #tpu.dimension_semantics<parallel>], iteration_bounds = array<i64: 1, 2>, scalar_prefetch = 0 : i64, scratch_operands = 0 : i64, tpu.core_type = #tpu.core_type<tc>, window_params = [{transform_indices = @transform_0, window_bounds = array<i64: 8, 4>}, {transform_indices = @transform_1, window_bounds = array<i64: 4, 32>}, {transform_indices = @transform_2, window_bounds = array<i64: 1, 32>}, {transform_indices = @transform_3, window_bounds = array<i64: 8, 32>}]} {
    %c0 = arith.constant 0 : index
    %c0_0 = arith.constant 0 : index
    %0 = vector.load %arg2[%c0, %c0_0] : memref<8x4xf32, #tpu.memory_space<vmem>>, vector<8x4xf32>
    %c0_1 = arith.constant 0 : index
    %c0_2 = arith.constant 0 : index
    %1 = vector.load %arg3[%c0_1, %c0_2] : memref<4x32xf32, #tpu.memory_space<vmem>>, vector<4x32xf32>
    %cst = arith.constant dense<0.000000e+00> : vector<8x32xf32>
    %2 = tpu.matmul %0, %1, %cst {dimension_numbers = #tpu.dot_dimension_numbers<[1], [0], [0], [1], [0, 0, 1, 1], [], []>} : vector<8x4xf32>, vector<4x32xf32>, vector<8x32xf32> -> vector<8x32xf32>
    %c0_3 = arith.constant 0 : index
    %c0_4 = arith.constant 0 : index
    %3 = vector.load %arg4[%c0_3, %c0_4] : memref<1x32xf32, #tpu.memory_space<vmem>>, vector<1x32xf32>
    %4 = vector.broadcast %3 : vector<1x32xf32> to vector<8x32xf32>
    %5 = arith.addf %2, %4 : vector<8x32xf32>
    %c0_5 = arith.constant 0 : index
    %c0_6 = arith.constant 0 : index
    %6 = vector.load %arg5[%c0_5, %c0_6] : memref<8x32xf32, #tpu.memory_space<vmem>>, vector<8x32xf32>
    tpu.vector_store %arg5[%c0_5, %c0_6], %5 {strides = array<i32>} : memref<8x32xf32, #tpu.memory_space<vmem>>, vector<8x32xf32>,
    return
  }
  func.func @transform_0(%arg0: i32, %arg1: i32) -> (i32, i32) {
    %c0_i32 = arith.constant 0 : i32
    %c0_i32_0 = arith.constant 0 : i32
    return %arg1, %c0_i32 : i32, i32
  }
  func.func @transform_1(%arg0: i32, %arg1: i32) -> (i32, i32) {
    %c0_i32 = arith.constant 0 : i32
    %c0_i32_0 = arith.constant 0 : i32
    return %c0_i32, %arg0 : i32, i32
  }
  func.func @transform_2(%arg0: i32, %arg1: i32) -> (i32, i32) {
    %c0_i32 = arith.constant 0 : i32
    %c0_i32_0 = arith.constant 0 : i32
    return %c0_i32, %arg0 : i32, i32
  }
  func.func @transform_3(%arg0: i32, %arg1: i32) -> (i32, i32) {
    %c0_i32 = arith.constant 0 : i32
    return %arg1, %arg0 : i32, i32
  }
}

</mosaic_0001>

<llo_original>
// kernel: tpu_custom_call.1
$region0: #{tpu_custom_call.1}
  #allocation0 [shape = 'u32[]', space=smem, size = 0x4, offset = 0x4, fixed_abs, tag = 'smem constant byte address 0x4 - core index']
  #allocation1 [shape = 'u32[144,128]{1,0:T(1,128)}', space=vmem, size = 0x12000, scoped, tag = 'internal scratch']
  %s0 = inlined_call_operand.vmem [shape: f32[16,4], index: 0, kind: input, shape index: {}]
  %s1 = inlined_call_operand.vmem [shape: f32[4,32], index: 1, kind: input, shape index: {}]
  %s2 = inlined_call_operand.vmem [shape: f32[1,32], index: 2, kind: input, shape index: {}]
  %s3 = inlined_call_operand.hbm [shape: f32[16,32], index: 3, kind: output, shape index: {}]
  %s4 = sld [smem:[#allocation0]]
  $region45: #{tpu_custom_call.1} parent=0
    _
  %s6 = ssub.s32 1, %s4
  %s7 = scalar_select 0, %s6, %s4
  $region1: #{tpu_custom_call.1} parent=0
    #allocation2 [shape = 'u8[8192]{0}', space=vmem, size = 0x2000, scoped, tag = 'output window, operand 0']
    #allocation3 [shape = 's32[2]{0}', space=sflag, size = 0x8, scoped, tag = 'scoped memory for tpu_custom_call.1']
    %8 = vsyncpa [#allocation3], 0
    %s9 = scalar_lea.sflag [#allocation3], 1
    %10 = vsyncpa %s9, 0
    loop: start=0, step=1, limit=4
    $region2: #{tpu_custom_call.1} parent=1 // loop_pre_header
      _
    $region3: #{tpu_custom_call.1} parent=1 // loop_header
      %s12 = sphi 0, %s16
      %p13 = scmp.ge.s32.totalorder %s12, 4
      %s19 = sphi 0, %s31
      %s20 = sphi 0, %s27
      %s21 = sphi 0, %s19
      %s22 = sphi 0, %s20
      %s23 = sphi 0, %s21
      %s24 = sphi 0, %s22
      %s34 = sphi 0, %s36
      %s37 = sphi 0, %s34
      %s38 = sphi 0, %s37
      %s54 = sphi 0, %s38
      %s60 = sphi 0, %s62
      %s63 = sphi 0, %s60
      %s64 = sphi 0, %s63
      %s80 = sphi 0, %s64
      %s86 = sphi 0, %s88
      %s89 = sphi 0, %s86
      %s90 = sphi 0, %s89
      %s106 = sphi 0, %s90
      %s114 = sphi 0, %s116
      %s117 = sphi 0, %s114
      %s118 = sphi 0, %s117
      %s134 = sphi 0, %s118
    $region4: #{tpu_custom_call.1} parent=1 // loop_header_branch
      %15 = sbr.rel (%p13) target = $region8
    $region5: #{tpu_custom_call.1} parent=1 // loop_body
      %s17 = ssub.s32 %s12, 1
      %s18 = ssub.s32 %s12, 2
      %s25 = sadd.s32 1, %s20
      %p26 = scmp.ge.s32.totalorder %s25, 2
      %s27 = scalar_select %p26, 0, %s25
      %s28 = sadd.s32 1, %s19
      %s29 = scalar_select %p26, %s28, %s19
      %p30 = scmp.ge.s32.totalorder %s29, 1
      %s31 = scalar_select %p30, 0, %s29
      %s32 = ssub.s32 %s20, %s27
      %p33 = scmp.eq.s32.totalorder %s32, 0
      %s35 = sadd.s32 %s34, 1
      %s36 = scalar_select %p33, %s34, %s35
      %p39 = pneg %p33
      %p40 = scmp.eq.s32.totalorder %s12, 1
      %p41 = por %p39, %p40
      %p42 = scmp.ne.s32.totalorder %s34, %s37
      %p43 = scmp.eq.s32.totalorder %s12, 0
      %p44 = por %p42, %p43
      %p45 = scmp.ne.s32.totalorder %s34, %s37
      %p46 = scmp.eq.s32.totalorder %s17, 1
      %p47 = por %p45, %p46
      %p48 = scmp.ne.s32.totalorder %s37, %s38
      %p49 = scmp.eq.s32.totalorder %s17, 0
      %p50 = por %p48, %p49
      %p51 = scmp.ne.s32.totalorder %s37, %s38
      %p52 = scmp.eq.s32.totalorder %s18, 1
      %p53 = por %p51, %p52
      %p55 = scmp.ne.s32.totalorder %s38, %s54
      %p56 = scmp.eq.s32.totalorder %s18, 0
      %p57 = por %p55, %p56
      %s58 = ssub.s32 %s19, %s31
      %p59 = scmp.eq.s32.totalorder %s58, 0
      %s61 = sadd.s32 %s60, 1
      %s62 = scalar_select %p59, %s60, %s61
      %p65 = pneg %p59
      %p66 = scmp.eq.s32.totalorder %s12, 1
      %p67 = por %p65, %p66
      %p68 = scmp.ne.s32.totalorder %s60, %s63
      %p69 = scmp.eq.s32.totalorder %s12, 0
      %p70 = por %p68, %p69
      %p71 = scmp.ne.s32.totalorder %s60, %s63
      %p72 = scmp.eq.s32.totalorder %s17, 1
      %p73 = por %p71, %p72
      %p74 = scmp.ne.s32.totalorder %s63, %s64
      %p75 = scmp.eq.s32.totalorder %s17, 0
      %p76 = por %p74, %p75
      %p77 = scmp.ne.s32.totalorder %s63, %s64
      %p78 = scmp.eq.s32.totalorder %s18, 1
      %p79 = por %p77, %p78
      %p81 = scmp.ne.s32.totalorder %s64, %s80
      %p82 = scmp.eq.s32.totalorder %s18, 0
      %p83 = por %p81, %p82
      %s84 = ssub.s32 %s19, %s31
      %p85 = scmp.eq.s32.totalorder %s84, 0
      %s87 = sadd.s32 %s86, 1
      %s88 = scalar_select %p85, %s86, %s87
      %p91 = pneg %p85
      %p92 = scmp.eq.s32.totalorder %s12, 1
      %p93 = por %p91, %p92
      %p94 = scmp.ne.s32.totalorder %s86, %s89
      %p95 = scmp.eq.s32.totalorder %s12, 0
      %p96 = por %p94, %p95
      %p97 = scmp.ne.s32.totalorder %s86, %s89
      %p98 = scmp.eq.s32.totalorder %s17, 1
      %p99 = por %p97, %p98
      %p100 = scmp.ne.s32.totalorder %s89, %s90
      %p101 = scmp.eq.s32.totalorder %s17, 0
      %p102 = por %p100, %p101
      %p103 = scmp.ne.s32.totalorder %s89, %s90
      %p104 = scmp.eq.s32.totalorder %s18, 1
      %p105 = por %p103, %p104
      %p107 = scmp.ne.s32.totalorder %s90, %s106
      %p108 = scmp.eq.s32.totalorder %s18, 0
      %p109 = por %p107, %p108
      %s110 = ssub.s32 %s20, %s27
      %s111 = ssub.s32 %s19, %s31
      %s112 = sor.u32 %s110, %s111
      %p113 = scmp.eq.s32.totalorder %s112, 0
      %s115 = sadd.s32 %s114, 1
      %s116 = scalar_select %p113, %s114, %s115
      %p119 = pneg %p113
      %p120 = scmp.eq.s32.totalorder %s12, 1
      %p121 = por %p119, %p120
      %p122 = scmp.ne.s32.totalorder %s114, %s117
      %p123 = scmp.eq.s32.totalorder %s12, 0
      %p124 = por %p122, %p123
      %p125 = scmp.ne.s32.totalorder %s114, %s117
      %p126 = scmp.eq.s32.totalorder %s17, 1
      %p127 = por %p125, %p126
      %p128 = scmp.ne.s32.totalorder %s117, %s118
      %p129 = scmp.eq.s32.totalorder %s17, 0
      %p130 = por %p128, %p129
      %p131 = scmp.ne.s32.totalorder %s117, %s118
      %p132 = scmp.eq.s32.totalorder %s18, 1
      %p133 = por %p131, %p132
      %p135 = scmp.ne.s32.totalorder %s118, %s134
      %p136 = scmp.eq.s32.totalorder %s18, 0
      %p137 = por %p135, %p136
      %p138 = scmp.le.s32.totalorder 1, %s12
      %p139 = scmp.lt.s32.totalorder %s12, 3
      %p140 = pnand %p138, %p139
      %p141 = pneg %p140
      // Predicated region
      $region9: #{tpu_custom_call.1} parent=5 // pred_check
        _
      $region10: #{tpu_custom_call.1} parent=5 // pred_check_branch
        %143 = sbr.rel (%p140) target = $region12
      $region11: #{tpu_custom_call.1} parent=5 // pred_region
        %s144 = ssub.s32 %s12, 1
        // Predicated region
        $region13: #{tpu_custom_call.1} parent=11 // pred_check
          %p145 = pneg %p76
        $region14: #{tpu_custom_call.1} parent=11 // pred_check_branch
          %147 = sbr.rel (%p145) target = $region16
        $region15: #{tpu_custom_call.1} parent=11 // pred_region
          %p148 = scmp.lt.s32.totalorder %s21, 0
          %s149 = scalar_select %p148, %s21, 0
          %s150 = smul.addr %s149, 4
          %s151 = scalar_lea.vmem %s1, %s150
        $region16: #{tpu_custom_call.1} parent=11 // pred_fallthru
          _
        // Predicated region
        $region17: #{tpu_custom_call.1} parent=11 // pred_check
          %p152 = pneg %p102
        $region18: #{tpu_custom_call.1} parent=11 // pred_check_branch
          %154 = sbr.rel (%p152) target = $region20
        $region19: #{tpu_custom_call.1} parent=11 // pred_region
          %p155 = scmp.lt.s32.totalorder %s21, 0
          %s156 = scalar_select %p155, %s21, 0
          %s157 = scalar_lea.vmem %s2, %s156
        $region20: #{tpu_custom_call.1} parent=11 // pred_fallthru
          _
      $region12: #{tpu_custom_call.1} parent=5 // pred_fallthru
        _
      %p158 = scmp.lt.s32.totalorder %s12, 2
      // Predicated region
      $region21: #{tpu_custom_call.1} parent=5 // pred_check
        %p159 = pneg %p158
      $region22: #{tpu_custom_call.1} parent=5 // pred_check_branch
        %161 = sbr.rel (%p159) target = $region24
      $region23: #{tpu_custom_call.1} parent=5 // pred_region
        // Predicated region
        $region25: #{tpu_custom_call.1} parent=23 // pred_check
          %p162 = pneg %p44
        $region26: #{tpu_custom_call.1} parent=23 // pred_check_branch
          %164 = sbr.rel (%p162) target = $region28
        $region27: #{tpu_custom_call.1} parent=23 // pred_region
          %p165 = scmp.lt.s32.totalorder %s20, 1
          %s166 = scalar_select %p165, %s20, 1
          %s167 = smul.addr %s166, 8
          %s168 = scalar_lea.vmem %s0, %s167
        $region28: #{tpu_custom_call.1} parent=23 // pred_fallthru
          _
      $region24: #{tpu_custom_call.1} parent=5 // pred_fallthru
        _
      %p169 = scmp.le.s32.totalorder 1, %s12
      %p170 = scmp.lt.s32.totalorder %s12, 3
      %p171 = pnand %p169, %p170
      %p172 = pneg %p171
      // Predicated region
      $region29: #{tpu_custom_call.1} parent=5 // pred_check
        _
      $region30: #{tpu_custom_call.1} parent=5 // pred_check_branch
        %174 = sbr.rel (%p171) target = $region32
      $region31: #{tpu_custom_call.1} parent=5 // pred_region
        %s175 = ssub.s32 %s12, 1
        %p176 = scmp.lt.s32.totalorder %s22, 1
        %s177 = scalar_select %p176, %s22, 1
        %s178 = smul.addr %s177, 8
        %s179 = scalar_lea.vmem %s0, %s178
        %p180 = pneg %p50
        %p181 = pneg %p47
        %p182 = scmp.lt.s32.totalorder %s21, 0
        %s183 = scalar_select %p182, %s21, 0
        %s184 = smul.addr %s183, 4
        %s185 = scalar_lea.vmem %s1, %s184
        %p186 = pneg %p76
        %p187 = pneg %p73
        %p188 = scmp.lt.s32.totalorder %s21, 0
        %s189 = scalar_select %p188, %s21, 0
        %s190 = scalar_lea.vmem %s2, %s189
        %p191 = pneg %p102
        %p192 = pneg %p99
        %p193 = pneg %p130
        %p194 = pneg %p127
        %s195 = sand.u32 %s117, 1
        %s196 = scalar_lea.sflag [#allocation3], %s195
        %s197 = sand.u32 %s117, 1
        %s198 = smul.addr %s197, 8
        %s199 = scalar_lea.vmem [#allocation2], %s198
        %p200 = scmp.lt.s32.totalorder %s22, 1
        %s201 = scalar_select %p200, %s22, 1
        %s202 = smul.addr %s201, 8
        %s203 = scalar_lea.vmem %s0, %s202
        %p204 = scmp.lt.s32.totalorder %s21, 0
        %s205 = scalar_select %p204, %s21, 0
        %s206 = smul.addr %s205, 4
        %s207 = scalar_lea.vmem %s1, %s206
        %p208 = scmp.lt.s32.totalorder %s21, 0
        %s209 = scalar_select %p208, %s21, 0
        %s210 = scalar_lea.vmem %s2, %s209
        %v211 = vld [vmem:[%s203] sm:$0xff]
        %v212 = vld [vmem:[%s207] sm:$0xf]
        %v213 = vld [vmem:[%s210] sm:$0x1]
        %v215 = vlaneseq
        %v216 = vshrl.u32 %v215, 7
        %v217 = vsub.s32 0, %v216
        %v218 = vrot.slane %v213, %v217
        %vm220 = vcmask 31744
        %v222 = vsel %vm220, %v211, 0
        %vm224 = vcmask 1043456
        %v226 = vsel %vm224, %v212, 0
        %228 = vmatprep.subr.mxu0 0.0
        %229 = vmatpush1.msra.mxu0 %v226
        %230 = vmatprep.subr.mxu0 0.0
        %231 = vmatpush1.msra.mxu0 0.0
        %232 = vmatprep.subr.mxu0 0.0
        %233 = vmatpush1.msra.mxu0 0.0
        %234 = vmatprep.subr.mxu0 0.0
        %235 = vmatpush1.msra.mxu0 0.0
        %236 = vmatprep.subr.mxu0 0.0
        %237 = vmatpush1.msra.mxu0 0.0
        %238 = vmatprep.subr.mxu0 0.0
        %239 = vmatpush1.msra.mxu0 0.0
        %240 = vmatprep.subr.mxu0 0.0
        %241 = vmatpush1.msra.mxu0 0.0
        %242 = vmatprep.subr.mxu0 0.0
        %243 = vmatpush1.msra.mxu0 0.0
        %244 = vmatprep.subr.mxu0 0.0
        %245 = vmatpush1.msra.mxu0 0.0
        %246 = vmatprep.subr.mxu0 0.0
        %247 = vmatpush1.msra.mxu0 0.0
        %248 = vmatprep.subr.mxu0 0.0
        %249 = vmatpush1.msra.mxu0 0.0
        %250 = vmatprep.subr.mxu0 0.0
        %251 = vmatpush1.msra.mxu0 0.0
        %252 = vmatprep.subr.mxu0 0.0
        %253 = vmatpush1.msra.mxu0 0.0
        %254 = vmatprep.subr.mxu0 0.0
        %255 = vmatpush1.msra.mxu0 0.0
        %256 = vmatprep.subr.mxu0 0.0
        %257 = vmatpush1.msra.mxu0 0.0
        %258 = vmatprep.subr.mxu0 0.0
        %259 = vmatpush1.msra.mxu0 0.0
        %260 = vmatprep.subr.mxu0 0.0
        %261 = vmatpush1.msra.mxu0 0.0
        %262 = vmatprep.subr.mxu0 0.0
        %263 = vmatpush1.msra.mxu0 0.0
        %264 = vmatprep.subr.mxu0 0.0
        %265 = vmatpush1.msra.mxu0 0.0
        %266 = vmatprep.subr.mxu0 0.0
        %267 = vmatpush1.msra.mxu0 0.0
        %268 = vmatprep.subr.mxu0 0.0
        %269 = vmatpush1.msra.mxu0 0.0
        %270 = vmatprep.subr.mxu0 0.0
        %271 = vmatpush1.msra.mxu0 0.0
        %272 = vmatprep.subr.mxu0 0.0
        %273 = vmatpush1.msra.mxu0 0.0
        %274 = vmatprep.subr.mxu0 0.0
        %275 = vmatpush1.msra.mxu0 0.0
        %276 = vmatprep.subr.mxu0 0.0
        %277 = vmatpush1.msra.mxu0 0.0
        %278 = vmatprep.subr.mxu0 0.0
        %279 = vmatpush1.msra.mxu0 0.0
        %280 = vmatprep.subr.mxu0 0.0
        %281 = vmatpush1.msra.mxu0 0.0
        %282 = vmatprep.subr.mxu0 0.0
        %283 = vmatpush1.msra.mxu0 0.0
        %284 = vmatprep.subr.mxu0 0.0
        %285 = vmatpush1.msra.mxu0 0.0
        %286 = vmatprep.subr.mxu0 0.0
        %287 = vmatpush1.msra.mxu0 0.0
        %288 = vmatprep.subr.mxu0 0.0
        %289 = vmatpush1.msra.mxu0 0.0
        %290 = vmatprep.subr.mxu0 0.0
        %291 = vmatpush1.msra.mxu0 0.0
        %292 = vmatprep.mubr.f32.mxu0 0.0
        %293 = vmatmul.mubr.f32.gmra.mrb[0].mxu0 %v222
        %v294 = vpop.f32.mrb[0].mxu0
        %v295 = vadd.f32 %v218, %v294
        %v296 = vpop.f32.mrb[0].mxu0
        %297 = vdwg.mxu0
        %vm298 = vcmask 261120
        %299 = vst.msk [vmem:[%s199] sm:$0xff] %vm298, %v295
        %s300 = sand.u32 %s117, 1
        %s301 = scalar_lea.sflag [#allocation3], %s300
        %s302 = sand.u32 %s117, 1
        %s303 = smul.addr %s302, 8
        %s304 = scalar_lea.vmem [#allocation2], %s303
        // Predicated region
        $region33: #{tpu_custom_call.1} parent=31 // pred_check
          %p305 = pneg %p127
        $region34: #{tpu_custom_call.1} parent=31 // pred_check_branch
          %307 = sbr.rel (%p305) target = $region36
        $region35: #{tpu_custom_call.1} parent=31 // pred_region
          %s309 = ssub.s32 128, 128
          %310 = vsyncadd %s301, %s309
          %s311 = sadd.s32 %s21, %s22
          %s312 = smul.addr %s311, 128
          %s313 = scalar_lea.hbm %s3, %s312
          %s315 = sshll.u32 %s304, 4
          %s316 = int_to_ptr.vmem [resolvable:$true] %s315
          %318 = dma.vmem_to_hbm [thread:$0]  %s316, 128, %s313, %s301
        $region36: #{tpu_custom_call.1} parent=31 // pred_fallthru
          _
      $region32: #{tpu_custom_call.1} parent=5 // pred_fallthru
        _
      %p319 = scmp.le.s32.totalorder 2, %s12
      // Predicated region
      $region37: #{tpu_custom_call.1} parent=5 // pred_check
        %p320 = pneg %p319
      $region38: #{tpu_custom_call.1} parent=5 // pred_check_branch
        %322 = sbr.rel (%p320) target = $region40
      $region39: #{tpu_custom_call.1} parent=5 // pred_region
        %s323 = ssub.s32 %s12, 2
        // Predicated region
        $region41: #{tpu_custom_call.1} parent=39 // pred_check
          %p324 = pneg %p133
        $region42: #{tpu_custom_call.1} parent=39 // pred_check_branch
          %326 = sbr.rel (%p324) target = $region44
        $region43: #{tpu_custom_call.1} parent=39 // pred_region
          %s327 = sand.u32 %s118, 1
          %s328 = scalar_lea.sflag [#allocation3], %s327
          %s329 = sand.u32 %s118, 1
          %s330 = smul.addr %s329, 8
          %s331 = scalar_lea.vmem [#allocation2], %s330
          %332 = dma.done %s328, 128
        $region44: #{tpu_custom_call.1} parent=39 // pred_fallthru
          _
      $region40: #{tpu_custom_call.1} parent=5 // pred_fallthru
        _
    $region6: #{tpu_custom_call.1} parent=1 // loop_footer
      %s16 = sadd.s32 1, %s12
    $region7: #{tpu_custom_call.1} parent=1 // loop_footer_branch
      %11 = sbr.rel target = $region3
    $region8: #{tpu_custom_call.1} parent=1 // loop_exit
      _
    %333 = vsyncpa [#allocation3], 1
    %s334 = scalar_lea.sflag [#allocation3], 1
    %335 = vsyncpa %s334, 1

</llo_original>
